<compile_context>
chip_gen: v6e
topology: v6e:2x2x1
jax: 0.10.0
libtpu: 0.0.40
codegen_flags: <defaults>
</compile_context>

<pallas_src>
import functools

import numpy as np
import jax
import jax.numpy as jnp
from jax.experimental import pallas as pl
from jax.experimental.pallas import tpu as pltpu

_LANE = 128


# ---------------------------------------------------------------------------
# Kernels (elementwise hot path, one VMEM tile per grid step)
# ---------------------------------------------------------------------------
def _quantize_kernel(x_ref, o_ref, *, scale, inv_scale, lo, hi):
    # y = clamp(round(x * qmax / t), lo, hi) * t / qmax, with scale = qmax/t and
    # inv_scale = t/qmax baked in as constants (two multiplies, no divides).
    x = x_ref[...].astype(jnp.float32)
    r = jnp.round(x * scale)  # round-half-to-even, same as torch.round
    o_ref[...] = (jnp.clip(r, lo, hi) * inv_scale).astype(o_ref.dtype)


def _clamp_kernel(x_ref, o_ref, *, clip):
    o_ref[...] = jnp.clip(x_ref[...], -clip, clip).astype(o_ref.dtype)


# ---------------------------------------------------------------------------
# Per-generation block sizing (v7x HBM is ~3.2 TB/s -> bigger blocks to amortize
# the ~0.35us per-step overhead; v5e already near roofline at 2 MiB).
# ---------------------------------------------------------------------------
def _auto_block_bytes():
    try:
        kind = jax.devices()[0].device_kind.lower()
    except Exception:
        kind = ""
    if "v7" in kind:
        # 64 MiB physical / 32 MiB scoped default -> raise the scoped limit but
        # stay well under physical (5 live 8 MiB buffers ~= 40 MiB).
        return 8 * 1024 * 1024, 48 * 1024 * 1024
    if "v6" in kind:
        # 5 live 4 MiB buffers ~= 20 MiB < 32 MiB scoped default.
        return 4 * 1024 * 1024, None
    # v5e (16 MiB scoped default) and older / unknown chips: stay conservative.
    return 2 * 1024 * 1024, None


# ---------------------------------------------------------------------------
# Layout helper: zero-copy 2-D factorization + block shape
# ---------------------------------------------------------------------------
def _choose_layout(x, target_bytes):
    total = x.size
    itemsize = x.dtype.itemsize
    sub_mult = max(8, 32 // itemsize)  # sublane packing: 8 f32 / 16 bf16 / 32 i8

    # 1) Lane-dense factorization when the flat size allows it (free reshape, no pad).
    lane_w = None
    for cand in (4096, 2048, 1024, 512, 256, 128):
        if total % cand == 0:
            lane_w = cand
            break
    if x.ndim == 0:
        x2d = jnp.reshape(x, (1, 1))
    elif lane_w is not None:
        x2d = jnp.reshape(x, (total // lane_w, lane_w))
    else:
        # Ragged flat size: collapse leading dims, keep the original last dim.
        # Still a free contiguous reshape; Pallas masks the narrow lane tail
        # (no pad/slice HBM copies).
        x2d = jnp.reshape(x, (-1, x.shape[-1]))

    rows, cols = x2d.shape

    # 2) Column block: full row when a sublane-group of rows fits the budget,
    #    else tile columns in multiples of 128 (boundary blocks are masked).
    if cols <= _LANE or cols * sub_mult * itemsize <= target_bytes:
        block_cols = cols
    else:
        block_cols = max(_LANE,
                         (target_bytes // (sub_mult * itemsize)) // _LANE * _LANE)
        block_cols = min(block_cols, (cols // _LANE) * _LANE)

    # 3) Row block: fill ~target_bytes per block.
    row_budget = max(sub_mult,
                     (target_bytes // (block_cols * itemsize)) // sub_mult * sub_mult)
    block_rows = rows if rows <= row_budget else row_budget

    # 4) Guarantee >=2 grid steps for non-tiny tensors so v7x's two TensorCores
    #    both get work (dimension_semantics are "parallel"); harmless on 1-TC chips.
    if (block_rows >= rows and block_cols >= cols and rows > 2 * sub_mult
            and total * itemsize >= 128 * 1024):
        half = ((rows + 1) // 2 + sub_mult - 1) // sub_mult * sub_mult
        block_rows = min(block_rows, half)

    grid = (pl.cdiv(rows, block_rows), pl.cdiv(cols, block_cols))
    return x2d, block_rows, block_cols, grid


# ---------------------------------------------------------------------------
# Threshold constants (float32 math for parity with the torch float32 path)
# ---------------------------------------------------------------------------
def _tq_constants(bits, signed, clip):
    lt = np.float32(np.log2(np.float32(clip)) - np.float32(1e-8))
    t = np.float32(np.exp(np.float32(np.ceil(lt)) * np.float32(np.log(2.0))))
    qmax = np.float32(2 ** (bits - 1) if signed else 2 ** bits)
    lo = np.float32(-qmax) if signed else np.float32(0.0)
    hi = np.float32(qmax - 1.0)
    return np.float32(qmax / t), np.float32(t / qmax), lo, hi


# ---------------------------------------------------------------------------
# Wrapper
# ---------------------------------------------------------------------------
def fixed_quantize(x, *, bits, signed, clip=1.0, qmode="F",
                   block_bytes=None, donate=False):
    """Pallas implementation of FixedQuantize.forward for a given qmode."""
    orig_shape = x.shape
    total = x.size
    if total == 0:
        return x

    target, vmem_limit = _auto_block_bytes()
    if block_bytes is not None:
        target = int(block_bytes)

    x2d, block_rows, block_cols, grid = _choose_layout(x, target)
    rows, cols = x2d.shape

    if qmode in ("T", "Q"):
        scale, inv_scale, lo, hi = _tq_constants(bits, signed, clip)
        kernel = functools.partial(_quantize_kernel, scale=scale,
                                   inv_scale=inv_scale, lo=lo, hi=hi)
        flops_per_elem = 5
    else:
        # 'F' / 'C': plain clamp to [-clip, clip]
        kernel = functools.partial(_clamp_kernel, clip=float(clip))
        flops_per_elem = 2

    steps = grid[0] * grid[1]
    # 3-deep input pipeline for long streaming grids (VMEM headroom checked above).
    in_kwargs = {"pipeline_mode": pl.Buffered(3)} if steps >= 4 else {}
    in_spec = pl.BlockSpec((block_rows, block_cols), lambda i, j: (i, j), **in_kwargs)
    out_spec = pl.BlockSpec((block_rows, block_cols), lambda i, j: (i, j))

    cp_kwargs = {"dimension_semantics": ("parallel", "parallel")}
    if vmem_limit is not None:
        cp_kwargs["vmem_limit_bytes"] = vmem_limit

    call_kwargs = {}
    if donate:
        call_kwargs["input_output_aliases"] = {0: 0}

    out2d = pl.pallas_call(
        kernel,
        out_shape=jax.ShapeDtypeStruct((rows, cols), x.dtype),
        grid_spec=pl.GridSpec(grid=grid, in_specs=[in_spec], out_specs=out_spec),
        compiler_params=pltpu.CompilerParams(**cp_kwargs),
        cost_estimate=pl.CostEstimate(
            flops=flops_per_elem * total,
            transcendentals=0,
            bytes_accessed=2 * total * x.dtype.itemsize),
        **call_kwargs,
    )(x2d)

    return jnp.reshape(out2d, orig_shape)


# ---------------------------------------------------------------------------
# Pure-JAX reference (same constants, for sanity check)
# ---------------------------------------------------------------------------
def fixed_quantize_ref(x, *, bits, signed, clip=1.0, qmode="F"):
    if qmode in ("T", "Q"):
        scale, inv_scale, lo, hi = _tq_constants(bits, signed, clip)
        xf = x.astype(jnp.float32)
        return (jnp.clip(jnp.round(xf * scale), lo, hi) * inv_scale).astype(x.dtype)
    return jnp.clip(x, -float(clip), float(clip))


if __name__ == "__main__":
    key = jax.random.PRNGKey(0)
    bits, signed, clip = 8, True, 1.0

    k0, k1, k2 = jax.random.split(key, 3)
    cases = [
        # small NCHW activation, values wider than clip so clamping/saturation triggers
        ("main", jax.random.normal(k0, (2, 4, 16, 16), dtype=jnp.float32) * 2.0, None),
        # ragged size -> exercises the zero-pad (original-last-dim) layout path
        ("ragged", jax.random.normal(k1, (2, 3, 5, 7), dtype=jnp.float32) * 2.0, None),
        # larger activation -> multi-step grid (2 TC split / boundary blocks)
        ("multiblock", jax.random.normal(k2, (4, 8, 128, 144), dtype=jnp.float32) * 2.0, None),
        # forced small blocks -> many-step grid; exercises the Buffered(3) input pipeline
        ("manystep", jax.random.normal(k2, (4, 8, 128, 144), dtype=jnp.float32) * 2.0, 64 * 1024),
    ]

    ok = True
    for name, xc, bb in cases:
        for qmode in ("F", "C", "T", "Q"):
            y = jax.block_until_ready(
                fixed_quantize(xc, bits=bits, signed=signed, clip=clip,
                               qmode=qmode, block_bytes=bb))
            y_ref = fixed_quantize_ref(xc, bits=bits, signed=signed, clip=clip, qmode=qmode)
            if not np.allclose(np.asarray(y), np.asarray(y_ref), atol=1e-6, rtol=1e-6):
                ok = False
                print(f"MISMATCH case={name} qmode={qmode}")

    # donated-input variant (input HBM buffer reused for the output)
    xq = jax.random.normal(k0, (2, 4, 16, 16), dtype=jnp.float32) * 2.0
    yq_ref = fixed_quantize_ref(xq, bits=bits, signed=signed, clip=clip, qmode="Q")
    fq_donate = jax.jit(
        functools.partial(fixed_quantize, bits=bits, signed=signed, clip=clip,
                          qmode="Q", donate=True),
        donate_argnums=(0,))
    yq = jax.block_until_ready(fq_donate(xq))
    if not np.allclose(np.asarray(yq), np.asarray(yq_ref), atol=1e-6, rtol=1e-6):
        ok = False
        print("MISMATCH case=donated qmode=Q")

    # TODO(synk): straight-through gradients (ST_ceil/ST_round backward), the lt
    # history list and the diag buffers are training/host-side state, not kernel work.
    if ok:
        print("KERNEL_OK")
</pallas_src>

<mosaic_0001>
module attributes {stable_mosaic.version = 11 : i64} {
  func.func @_clamp_kernel(%arg0: i32, %arg1: i32, %arg2: memref<1x2048xf32, #tpu.memory_space<vmem>>, %arg3: memref<1x2048xf32, #tpu.memory_space<vmem>>) attributes {dimension_semantics = [#tpu.dimension_semantics<parallel>, #tpu.dimension_semantics<parallel>], iteration_bounds = array<i64: 1, 1>, scalar_prefetch = 0 : i64, scratch_operands = 0 : i64, tpu.core_type = #tpu.core_type<tc>, window_params = [{transform_indices = @transform_0, window_bounds = array<i64: 1, 2048>}, {transform_indices = @transform_1, window_bounds = array<i64: 1, 2048>}]} {
    %c0 = arith.constant 0 : index
    %c0_0 = arith.constant 0 : index
    %0 = vector.load %arg2[%c0, %c0_0] : memref<1x2048xf32, #tpu.memory_space<vmem>>, vector<1x2048xf32>
    %cst = arith.constant -1.000000e+00 : f32
    %cst_1 = arith.constant 1.000000e+00 : f32
    %1 = vector.broadcast %cst : f32 to vector<1x2048xf32>
    %2 = arith.maximumf %1, %0 : vector<1x2048xf32>
    %3 = vector.broadcast %cst_1 : f32 to vector<1x2048xf32>
    %4 = arith.minimumf %3, %2 : vector<1x2048xf32>
    %c0_2 = arith.constant 0 : index
    %c0_3 = arith.constant 0 : index
    %5 = vector.load %arg3[%c0_2, %c0_3] : memref<1x2048xf32, #tpu.memory_space<vmem>>, vector<1x2048xf32>
    tpu.vector_store %arg3[%c0_2, %c0_3], %4 {strides = array<i32>} : memref<1x2048xf32, #tpu.memory_space<vmem>>, vector<1x2048xf32>,
    return
  }
  func.func @transform_0(%arg0: i32, %arg1: i32) -> (i32, i32) {
    %c0_i32 = arith.constant 0 : i32
    return %arg0, %arg1 : i32, i32
  }
  func.func @transform_1(%arg0: i32, %arg1: i32) -> (i32, i32) {
    %c0_i32 = arith.constant 0 : i32
    return %arg0, %arg1 : i32, i32
  }
}

</mosaic_0001>

<llo_original>
// kernel: tpu_custom_call.1
$region0: #{tpu_custom_call.1}
  #allocation0 [shape = 'u32[]', space=smem, size = 0x4, offset = 0x4, fixed_abs, tag = 'smem constant byte address 0x4 - core index']
  #allocation1 [shape = 'u32[144,128]{1,0:T(1,128)}', space=vmem, size = 0x12000, scoped, tag = 'internal scratch']
  %s0 = inlined_call_operand.hbm [shape: f32[1,2048], index: 0, kind: input, shape index: {}]
  %s1 = inlined_call_operand.hbm [shape: f32[1,2048], index: 1, kind: output, shape index: {}]
  %s2 = sld [smem:[#allocation0]]
  $region18: #{tpu_custom_call.1} parent=0
    _
  %s4 = ssub.s32 1, %s2
  %s5 = scalar_select 0, %s4, %s2
  $region1: #{tpu_custom_call.1} parent=0
    #allocation2 [shape = 'u8[8192]{0}', space=vmem, size = 0x2000, scoped, tag = 'input window, operand 0, single buffered']
    #allocation3 [shape = 's32[1]{0}', space=sflag, size = 0x4, scoped, tag = 'scoped memory for tpu_custom_call.1']
    #allocation4 [shape = 's32[1]{0}', space=sflag, size = 0x4, scoped, tag = 'scoped memory for tpu_custom_call.1']
    #allocation5 [shape = 'u8[8192]{0}', space=vmem, size = 0x2000, scoped, tag = 'output window, operand 0, single buffered']
    %6 = vsyncpa [#allocation3], 0
    %7 = vsyncpa [#allocation4], 0
    // Predicated region
    $region2: #{tpu_custom_call.1} parent=1 // pred_check
      _
    $region3: #{tpu_custom_call.1} parent=1 // pred_check_branch
      %9 = sbr.rel (0) target = $region5
    $region4: #{tpu_custom_call.1} parent=1 // pred_region
      %s11 = ssub.s32 256, 256
      %12 = vsyncadd [#allocation3], %s11
      %s14 = sshll.u32 [#allocation2], 4
      %s15 = int_to_ptr.vmem [resolvable:$true] %s14
      %17 = dma.hbm_to_vmem [thread:$0]  %s0, 256, %s15, [#allocation3]
    $region5: #{tpu_custom_call.1} parent=1 // pred_fallthru
      _
    // Predicated region
    $region6: #{tpu_custom_call.1} parent=1 // pred_check
      _
    $region7: #{tpu_custom_call.1} parent=1 // pred_check_branch
      %19 = sbr.rel (0) target = $region9
    $region8: #{tpu_custom_call.1} parent=1 // pred_region
      %20 = dma.done [#allocation3], 256
    $region9: #{tpu_custom_call.1} parent=1 // pred_fallthru
      _
    %v21 = vld [vmem:[#allocation2] sm:$0xff]
    %v22 = vld [vmem:[#allocation2 + $0x8] sm:$0xff]
    %v23 = vmax.f32 %v21, -1.0
    %v24 = vmax.f32 %v22, -1.0
    %v25 = vmin.f32 %v23, 1.0
    %v26 = vmin.f32 %v24, 1.0
    %27 = vst [vmem:[#allocation5] sm:$0xff] %v25
    %28 = vst [vmem:[#allocation5 + $0x8] sm:$0xff] %v26
    // Predicated region
    $region10: #{tpu_custom_call.1} parent=1 // pred_check
      _
    $region11: #{tpu_custom_call.1} parent=1 // pred_check_branch
      %30 = sbr.rel (0) target = $region13
    $region12: #{tpu_custom_call.1} parent=1 // pred_region
      %s32 = ssub.s32 256, 256
      %33 = vsyncadd [#allocation4], %s32
      %s35 = sshll.u32 [#allocation5], 4
      %s36 = int_to_ptr.vmem [resolvable:$true] %s35
      %38 = dma.vmem_to_hbm [thread:$0]  %s36, 256, %s1, [#allocation4]
    $region13: #{tpu_custom_call.1} parent=1 // pred_fallthru
      _
    // Predicated region
    $region14: #{tpu_custom_call.1} parent=1 // pred_check
      _
    $region15: #{tpu_custom_call.1} parent=1 // pred_check_branch
      %40 = sbr.rel (0) target = $region17
    $region16: #{tpu_custom_call.1} parent=1 // pred_region
      %41 = dma.done [#allocation4], 256
    $region17: #{tpu_custom_call.1} parent=1 // pred_fallthru
      _
    %42 = vsyncpa [#allocation3], 1
    %43 = vsyncpa [#allocation4], 1

</llo_original>
